<compile_context>
chip_gen: v7x
topology: tpu7x:2x2x1
jax: 0.10.0
libtpu: 0.0.40
codegen_flags: <defaults>
</compile_context>

<pallas_src>
import jax
import jax.numpy as jnp
from jax.experimental import pallas as pl
from jax.experimental.pallas import tpu as pltpu

_LANE = 128      # vreg lane width
_SUBLANE = 8     # vreg sublane width


def _round_up(v, m):
    return (v + m - 1) // m * m


def _sigmoid(s):
    # 1 / (1 + exp(-s)); exp and the approximate reciprocal both issue on the EUP.
    return pl.reciprocal(1.0 + jnp.exp(-s), approx=True)


def mlp_kernel(x_ref, w1_ref, w2_ref, o_ref):
    # z  = X @ W1            (TB, H_pad)   -- lane-dense, single MXU call
    z = jnp.dot(x_ref[...], w1_ref[...], preferred_element_type=jnp.float32)
    # z2 = sigmoid(z); padded hidden columns become 0.5 but are multiplied by
    # zero rows of the padded W2, so they contribute nothing downstream.
    z2 = _sigmoid(z)
    # z3 = z2 @ W2           (TB, O_pad)   -- full (K=128, N=128) MXU tile
    z3 = jnp.dot(z2, w2_ref[...], preferred_element_type=jnp.float32)
    # o  = sigmoid(z3); stored lane-dense (last dim = O_pad, multiple of 128)
    o_ref[...] = _sigmoid(z3).astype(o_ref.dtype)


def neural_network_forward(x, w1, w2, *, max_batch_tile=512):
    """Pallas forward pass of the two-layer MLP.

    x : (B, inputSize) float32
    w1: (inputSize, hiddenSize) float32
    w2: (hiddenSize, outputSize) float32
    returns (B, outputSize) float32
    """
    B, D = x.shape
    _, H = w1.shape
    _, O = w2.shape

    # --- layout plumbing (wrapper-side, zero-pad once) -----------------------
    H_pad = _round_up(H, _LANE)          # lane-dense intermediate z / z2
    O_pad = _round_up(O, _LANE)          # lane-dense output slab (unmasked vst)
    B_pad = _round_up(B, _SUBLANE)
    TB = min(B_pad, max_batch_tile)      # batch tile; grid amortizes per-step overhead
    B_pad = _round_up(B_pad, TB)

    x_p = jnp.pad(x.astype(jnp.float32), ((0, B_pad - B), (0, 0)))
    w1_p = jnp.pad(w1.astype(jnp.float32), ((0, 0), (0, H_pad - H)))
    # zero rows beyond H neutralize the sigmoid(0)=0.5 values of padded hidden lanes;
    # zero cols beyond O are sliced off below.
    w2_p = jnp.pad(w2.astype(jnp.float32), ((0, H_pad - H), (0, O_pad - O)))

    out_pad = pl.pallas_call(
        mlp_kernel,
        out_shape=jax.ShapeDtypeStruct((B_pad, O_pad), jnp.float32),
        grid_spec=pltpu.PrefetchScalarGridSpec(
            num_scalar_prefetch=0,
            grid=(B_pad // TB,),
            in_specs=[
                pl.BlockSpec((TB, D), lambda i: (i, 0)),        # batch-tiled activations
                pl.BlockSpec((D, H_pad), lambda i: (0, 0)),     # W1 resident / replicated
                pl.BlockSpec((H_pad, O_pad), lambda i: (0, 0)), # W2 resident / replicated
            ],
            out_specs=pl.BlockSpec((TB, O_pad), lambda i: (i, 0)),
        ),
        compiler_params=pltpu.CompilerParams(
            # batch tiles are independent -> shard across TensorCores (v7x dual-TC)
            dimension_semantics=("parallel",),
        ),
    )(x_p, w1_p, w2_p)

    return out_pad[:B, :O]


def neural_network_predict(x, w1, w2):
    # Mirrors Neural_Network.predict: softmax over the forward output.
    o = neural_network_forward(x, w1, w2)
    if o.shape[-1] == 1:
        # softmax over a size-1 axis is identically 1.0 (faithful to F.softmax in the
        # reference); skip the extra op / HBM round-trip.
        return jnp.ones_like(o)
    return jax.nn.softmax(o, axis=-1)


if __name__ == "__main__":
    # Module was constructed as Neural_Network(inputSize, 3, 1).
    B, INPUT, HIDDEN, OUTPUT = 8, 16, 3, 1

    key = jax.random.PRNGKey(0)
    kx, kw1, kw2 = jax.random.split(key, 3)

    x = jax.random.normal(kx, (B, INPUT), dtype=jnp.float32)
    W1 = jax.random.normal(kw1, (INPUT, HIDDEN), dtype=jnp.float32)
    W2 = jax.random.normal(kw2, (HIDDEN, OUTPUT), dtype=jnp.float32)

    out = jax.block_until_ready(neural_network_forward(x, W1, W2))

    # Reference check in plain JAX (exact sigmoid; kernel uses EUP approx reciprocal,
    # so allow a slightly looser tolerance).
    ref = 1.0 / (1.0 + jnp.exp(-(1.0 / (1.0 + jnp.exp(-(x @ W1))) @ W2)))
    assert out.shape == (B, OUTPUT)
    assert bool(jnp.allclose(out, ref, atol=5e-3, rtol=5e-3)), float(
        jnp.max(jnp.abs(out - ref)))

    pred = jax.block_until_ready(neural_network_predict(x, W1, W2))
    assert pred.shape == (B, OUTPUT)
    assert bool(jnp.allclose(pred, jnp.ones_like(pred)))

    print("KERNEL_OK")
</pallas_src>

<mosaic_0001>
module attributes {stable_mosaic.version = 11 : i64} {
  func.func @mlp_kernel(%arg0: i32, %arg1: memref<8x16xf32, #tpu.memory_space<vmem>>, %arg2: memref<16x128xf32, #tpu.memory_space<vmem>>, %arg3: memref<128x128xf32, #tpu.memory_space<vmem>>, %arg4: memref<8x128xf32, #tpu.memory_space<vmem>>) attributes {dimension_semantics = [#tpu.dimension_semantics<parallel>], iteration_bounds = array<i64: 1>, scalar_prefetch = 0 : i64, scratch_operands = 0 : i64, tpu.core_type = #tpu.core_type<tc>, window_params = [{transform_indices = @transform_0, window_bounds = array<i64: 8, 16>}, {pipeline_mode = #tpu.pipeline_mode<synchronous>, transform_indices = @transform_1, window_bounds = array<i64: 16, 128>}, {pipeline_mode = #tpu.pipeline_mode<synchronous>, transform_indices = @transform_2, window_bounds = array<i64: 128, 128>}, {transform_indices = @transform_3, window_bounds = array<i64: 8, 128>}]} {
    %c0 = arith.constant 0 : index
    %c0_0 = arith.constant 0 : index
    %0 = vector.load %arg1[%c0, %c0_0] : memref<8x16xf32, #tpu.memory_space<vmem>>, vector<8x16xf32>
    %c0_1 = arith.constant 0 : index
    %c0_2 = arith.constant 0 : index
    %1 = vector.load %arg2[%c0_1, %c0_2] : memref<16x128xf32, #tpu.memory_space<vmem>>, vector<16x128xf32>
    %cst = arith.constant dense<0.000000e+00> : vector<8x128xf32>
    %2 = tpu.matmul %0, %1, %cst {dimension_numbers = #tpu.dot_dimension_numbers<[1], [0], [0], [1], [0, 0, 1, 1], [], []>} : vector<8x16xf32>, vector<16x128xf32>, vector<8x128xf32> -> vector<8x128xf32>
    %cst_3 = arith.constant 0.000000e+00 : f32
    %3 = vector.broadcast %cst_3 : f32 to vector<8x128xf32>
    %4 = arith.subf %3, %2 : vector<8x128xf32>
    %5 = math.exp %4 : vector<8x128xf32>
    %cst_4 = arith.constant 1.000000e+00 : f32
    %6 = vector.broadcast %cst_4 : f32 to vector<8x128xf32>
    %7 = arith.addf %6, %5 : vector<8x128xf32>
    %8 = tpu.reciprocal %7 {approx = true} : vector<8x128xf32> -> vector<8x128xf32>
    %c0_5 = arith.constant 0 : index
    %c0_6 = arith.constant 0 : index
    %9 = vector.load %arg3[%c0_5, %c0_6] : memref<128x128xf32, #tpu.memory_space<vmem>>, vector<128x128xf32>
    %cst_7 = arith.constant dense<0.000000e+00> : vector<8x128xf32>
    %10 = tpu.matmul %8, %9, %cst_7 {dimension_numbers = #tpu.dot_dimension_numbers<[1], [0], [0], [1], [0, 0, 1, 1], [], []>} : vector<8x128xf32>, vector<128x128xf32>, vector<8x128xf32> -> vector<8x128xf32>
    %cst_8 = arith.constant 0.000000e+00 : f32
    %11 = vector.broadcast %cst_8 : f32 to vector<8x128xf32>
    %12 = arith.subf %11, %10 : vector<8x128xf32>
    %13 = math.exp %12 : vector<8x128xf32>
    %cst_9 = arith.constant 1.000000e+00 : f32
    %14 = vector.broadcast %cst_9 : f32 to vector<8x128xf32>
    %15 = arith.addf %14, %13 : vector<8x128xf32>
    %16 = tpu.reciprocal %15 {approx = true} : vector<8x128xf32> -> vector<8x128xf32>
    %c0_10 = arith.constant 0 : index
    %c0_11 = arith.constant 0 : index
    %17 = vector.load %arg4[%c0_10, %c0_11] : memref<8x128xf32, #tpu.memory_space<vmem>>, vector<8x128xf32>
    tpu.vector_store %arg4[%c0_10, %c0_11], %16 {strides = array<i32>} : memref<8x128xf32, #tpu.memory_space<vmem>>, vector<8x128xf32>,
    return
  }
  func.func @transform_0(%arg0: i32) -> (i32, i32) {
    %c0_i32 = arith.constant 0 : i32
    %c0_i32_0 = arith.constant 0 : i32
    return %arg0, %c0_i32 : i32, i32
  }
  func.func @transform_1(%arg0: i32) -> (i32, i32) {
    %c0_i32 = arith.constant 0 : i32
    %c0_i32_0 = arith.constant 0 : i32
    %c0_i32_1 = arith.constant 0 : i32
    return %c0_i32, %c0_i32_0 : i32, i32
  }
  func.func @transform_2(%arg0: i32) -> (i32, i32) {
    %c0_i32 = arith.constant 0 : i32
    %c0_i32_0 = arith.constant 0 : i32
    %c0_i32_1 = arith.constant 0 : i32
    return %c0_i32, %c0_i32_0 : i32, i32
  }
  func.func @transform_3(%arg0: i32) -> (i32, i32) {
    %c0_i32 = arith.constant 0 : i32
    %c0_i32_0 = arith.constant 0 : i32
    return %arg0, %c0_i32 : i32, i32
  }
}

</mosaic_0001>

<llo_original>
// kernel: tpu_custom_call.1
$region0: #{tpu_custom_call.1}
  #allocation0 [shape = 'u32[]', space=smem, size = 0x4, offset = 0x4, fixed_abs, tag = 'smem constant byte address 0x4 - core index']
  #allocation1 [shape = 'u32[144,128]{1,0:T(1,128)}', space=vmem, size = 0x12000, scoped, tag = 'internal scratch']
  %s0 = inlined_call_operand.hbm [shape: f32[8,16], index: 0, kind: input, shape index: {}]
  %s1 = inlined_call_operand.hbm [shape: f32[16,128], index: 1, kind: input, shape index: {}]
  %s2 = inlined_call_operand.hbm [shape: f32[128,128], index: 2, kind: input, shape index: {}]
  %s3 = inlined_call_operand.hbm [shape: f32[8,128], index: 3, kind: output, shape index: {}]
  %s4 = sld [smem:[#allocation0]]
  $region34: #{tpu_custom_call.1} parent=0
    _
  %s6 = ssub.s32 1, %s4
  %s7 = scalar_select 0, %s6, %s4
  $region1: #{tpu_custom_call.1} parent=0
    #allocation2 [shape = 'u8[4096]{0}', space=vmem, size = 0x1000, scoped, tag = 'input window, operand 0, single buffered']
    #allocation3 [shape = 's32[1]{0}', space=sflag, size = 0x4, scoped, tag = 'scoped memory for tpu_custom_call.1']
    #allocation4 [shape = 's32[1]{0}', space=sflag, size = 0x4, scoped, tag = 'scoped memory for tpu_custom_call.1']
    #allocation5 [shape = 'u8[8192]{0}', space=vmem, size = 0x2000, scoped, tag = 'input window, operand 1, single buffered']
    #allocation6 [shape = 's32[1]{0}', space=sflag, size = 0x4, scoped, tag = 'scoped memory for tpu_custom_call.1']
    #allocation7 [shape = 'u8[65536]{0}', space=vmem, size = 0x10000, scoped, tag = 'input window, operand 2, single buffered']
    #allocation8 [shape = 'u8[4096]{0}', space=vmem, size = 0x1000, scoped, tag = 'output window, operand 0, single buffered']
    %8 = vsyncpa [#allocation3], 0
    %9 = vsyncpa [#allocation6], 0
    %10 = vsyncpa [#allocation4], 0
    // Predicated region
    $region2: #{tpu_custom_call.1} parent=1 // pred_check
      _
    $region3: #{tpu_custom_call.1} parent=1 // pred_check_branch
      %12 = sbr.rel (0) target = $region5
    $region4: #{tpu_custom_call.1} parent=1 // pred_region
      %s14 = ssub.s32 128, 128
      %15 = vsyncadd [#allocation3], %s14
      %s17 = sshll.u32 [#allocation2], 4
      %s18 = int_to_ptr.vmem [resolvable:$true] %s17
      %20 = dma.hbm_to_vmem [thread:$0]  %s0, 128, %s18, [#allocation3]
    $region5: #{tpu_custom_call.1} parent=1 // pred_fallthru
      _
    // Predicated region
    $region6: #{tpu_custom_call.1} parent=1 // pred_check
      _
    $region7: #{tpu_custom_call.1} parent=1 // pred_check_branch
      %22 = sbr.rel (0) target = $region9
    $region8: #{tpu_custom_call.1} parent=1 // pred_region
      %s24 = ssub.s32 256, 256
      %25 = vsyncadd [#allocation6], %s24
      %s26 = sshll.u32 [#allocation5], 4
      %s27 = int_to_ptr.vmem [resolvable:$true] %s26
      %32 = dma.hbm_to_vmem [thread:$0]  %s1, 256, %s27, [#allocation6], 128, 128, 8
    $region9: #{tpu_custom_call.1} parent=1 // pred_fallthru
      _
    // Predicated region
    $region10: #{tpu_custom_call.1} parent=1 // pred_check
      _
    $region11: #{tpu_custom_call.1} parent=1 // pred_check_branch
      %34 = sbr.rel (0) target = $region13
    $region12: #{tpu_custom_call.1} parent=1 // pred_region
      %s36 = ssub.s32 2048, 2048
      %37 = vsyncadd [#allocation6], %s36
      %s38 = sshll.u32 [#allocation7], 4
      %s39 = int_to_ptr.vmem [resolvable:$true] %s38
      %44 = dma.hbm_to_vmem [thread:$0]  %s2, 2048, %s39, [#allocation6], 128, 128, 8
    $region13: #{tpu_custom_call.1} parent=1 // pred_fallthru
      _
    // Predicated region
    $region14: #{tpu_custom_call.1} parent=1 // pred_check
      _
    $region15: #{tpu_custom_call.1} parent=1 // pred_check_branch
      %46 = sbr.rel (0) target = $region17
    $region16: #{tpu_custom_call.1} parent=1 // pred_region
      %47 = dma.done [#allocation3], 128
    $region17: #{tpu_custom_call.1} parent=1 // pred_fallthru
      _
    // Predicated region
    $region18: #{tpu_custom_call.1} parent=1 // pred_check
      _
    $region19: #{tpu_custom_call.1} parent=1 // pred_check_branch
      %49 = sbr.rel (0) target = $region21
    $region20: #{tpu_custom_call.1} parent=1 // pred_region
      %50 = dma.done [#allocation6], 256
    $region21: #{tpu_custom_call.1} parent=1 // pred_fallthru
      _
    // Predicated region
    $region22: #{tpu_custom_call.1} parent=1 // pred_check
      _
    $region23: #{tpu_custom_call.1} parent=1 // pred_check_branch
      %52 = sbr.rel (0) target = $region25
    $region24: #{tpu_custom_call.1} parent=1 // pred_region
      %53 = dma.done [#allocation6], 2048
    $region25: #{tpu_custom_call.1} parent=1 // pred_fallthru
      _
    %v54 = vld [vmem:[#allocation2] sm:$0xff]
    %v55 = vld [vmem:[#allocation5] sm:$0xff]
    %v56 = vld [vmem:[#allocation5 + $0x8] sm:$0xff]
    %vm57 = vcmask 130048
    %v59 = vsel %vm57, %v54, 0
    %61 = vmatprep.subr.mxu0 0.0
    %62 = vmatpush1.msra.mxu0 %v55
    %63 = vmatprep.subr.mxu0 0.0
    %64 = vmatpush1.msra.mxu0 %v56
    %65 = vmatprep.subr.mxu0 0.0
    %66 = vmatpush1.msra.mxu0 0.0
    %67 = vmatprep.subr.mxu0 0.0
    %68 = vmatpush1.msra.mxu0 0.0
    %69 = vmatprep.subr.mxu0 0.0
    %70 = vmatpush1.msra.mxu0 0.0
    %71 = vmatprep.subr.mxu0 0.0
    %72 = vmatpush1.msra.mxu0 0.0
    %73 = vmatprep.subr.mxu0 0.0
    %74 = vmatpush1.msra.mxu0 0.0
    %75 = vmatprep.subr.mxu0 0.0
    %76 = vmatpush1.msra.mxu0 0.0
    %77 = vmatprep.subr.mxu0 0.0
    %78 = vmatpush1.msra.mxu0 0.0
    %79 = vmatprep.subr.mxu0 0.0
    %80 = vmatpush1.msra.mxu0 0.0
    %81 = vmatprep.subr.mxu0 0.0
    %82 = vmatpush1.msra.mxu0 0.0
    %83 = vmatprep.subr.mxu0 0.0
    %84 = vmatpush1.msra.mxu0 0.0
    %85 = vmatprep.subr.mxu0 0.0
    %86 = vmatpush1.msra.mxu0 0.0
    %87 = vmatprep.subr.mxu0 0.0
    %88 = vmatpush1.msra.mxu0 0.0
    %89 = vmatprep.subr.mxu0 0.0
    %90 = vmatpush1.msra.mxu0 0.0
    %91 = vmatprep.subr.mxu0 0.0
    %92 = vmatpush1.msra.mxu0 0.0
    %93 = vmatprep.subr.mxu0 0.0
    %94 = vmatpush1.msra.mxu0 0.0
    %95 = vmatprep.subr.mxu0 0.0
    %96 = vmatpush1.msra.mxu0 0.0
    %97 = vmatprep.subr.mxu0 0.0
    %98 = vmatpush1.msra.mxu0 0.0
    %99 = vmatprep.subr.mxu0 0.0
    %100 = vmatpush1.msra.mxu0 0.0
    %101 = vmatprep.subr.mxu0 0.0
    %102 = vmatpush1.msra.mxu0 0.0
    %103 = vmatprep.subr.mxu0 0.0
    %104 = vmatpush1.msra.mxu0 0.0
    %105 = vmatprep.subr.mxu0 0.0
    %106 = vmatpush1.msra.mxu0 0.0
    %107 = vmatprep.subr.mxu0 0.0
    %108 = vmatpush1.msra.mxu0 0.0
    %109 = vmatprep.subr.mxu0 0.0
    %110 = vmatpush1.msra.mxu0 0.0
    %111 = vmatprep.subr.mxu0 0.0
    %112 = vmatpush1.msra.mxu0 0.0
    %113 = vmatprep.subr.mxu0 0.0
    %114 = vmatpush1.msra.mxu0 0.0
    %115 = vmatprep.subr.mxu0 0.0
    %116 = vmatpush1.msra.mxu0 0.0
    %117 = vmatprep.subr.mxu0 0.0
    %118 = vmatpush1.msra.mxu0 0.0
    %119 = vmatprep.subr.mxu0 0.0
    %120 = vmatpush1.msra.mxu0 0.0
    %121 = vmatprep.subr.mxu0 0.0
    %122 = vmatpush1.msra.mxu0 0.0
    %123 = vmatprep.subr.mxu0 0.0
    %124 = vmatpush1.msra.mxu0 0.0
    %125 = vmatprep.mubr.f32.mxu0 0.0
    %126 = vmatmul.mubr.f32.gmra.mrb[0].mxu0 %v59
    %v127 = vpop.f32.mrb[0].mxu0
    %v128 = vadd.f32 0.0, %v127
    %v129 = vpop.f32.mrb[0].mxu0
    %130 = vdwg.mxu0
    %v131 = vsub.f32 0.0, %v128
    %v132 = vmul.f32 %v131, 1.442695
    %v133 = vpow.pop %v132
    %v134 = vadd.f32 %v133, 1.0
    %v135 = vrcp.pop %v134
    %v136 = vld [vmem:[#allocation7] sm:$0xff]
    %v137 = vld [vmem:[#allocation7 + $0x8] sm:$0xff]
    %v138 = vld [vmem:[#allocation7 + $0x10] sm:$0xff]
    %v139 = vld [vmem:[#allocation7 + $0x18] sm:$0xff]
    %v140 = vld [vmem:[#allocation7 + $0x20] sm:$0xff]
    %v141 = vld [vmem:[#allocation7 + $0x28] sm:$0xff]
    %v142 = vld [vmem:[#allocation7 + $0x30] sm:$0xff]
    %v143 = vld [vmem:[#allocation7 + $0x38] sm:$0xff]
    %v144 = vld [vmem:[#allocation7 + $0x40] sm:$0xff]
    %v145 = vld [vmem:[#allocation7 + $0x48] sm:$0xff]
    %v146 = vld [vmem:[#allocation7 + $0x50] sm:$0xff]
    %v147 = vld [vmem:[#allocation7 + $0x58] sm:$0xff]
    %v148 = vld [vmem:[#allocation7 + $0x60] sm:$0xff]
    %v149 = vld [vmem:[#allocation7 + $0x68] sm:$0xff]
    %v150 = vld [vmem:[#allocation7 + $0x70] sm:$0xff]
    %v151 = vld [vmem:[#allocation7 + $0x78] sm:$0xff]
    %152 = vmatprep.subr.mxu0 0.0
    %153 = vmatpush1.msra.mxu0 %v136
    %154 = vmatprep.subr.mxu0 0.0
    %155 = vmatpush1.msra.mxu0 %v137
    %156 = vmatprep.subr.mxu0 0.0
    %157 = vmatpush1.msra.mxu0 %v138
    %158 = vmatprep.subr.mxu0 0.0
    %159 = vmatpush1.msra.mxu0 %v139
    %160 = vmatprep.subr.mxu0 0.0
    %161 = vmatpush1.msra.mxu0 %v140
    %162 = vmatprep.subr.mxu0 0.0
    %163 = vmatpush1.msra.mxu0 %v141
    %164 = vmatprep.subr.mxu0 0.0
    %165 = vmatpush1.msra.mxu0 %v142
    %166 = vmatprep.subr.mxu0 0.0
    %167 = vmatpush1.msra.mxu0 %v143
    %168 = vmatprep.subr.mxu0 0.0
    %169 = vmatpush1.msra.mxu0 %v144
    %170 = vmatprep.subr.mxu0 0.0
    %171 = vmatpush1.msra.mxu0 %v145
    %172 = vmatprep.subr.mxu0 0.0
    %173 = vmatpush1.msra.mxu0 %v146
    %174 = vmatprep.subr.mxu0 0.0
    %175 = vmatpush1.msra.mxu0 %v147
    %176 = vmatprep.subr.mxu0 0.0
    %177 = vmatpush1.msra.mxu0 %v148
    %178 = vmatprep.subr.mxu0 0.0
    %179 = vmatpush1.msra.mxu0 %v149
    %180 = vmatprep.subr.mxu0 0.0
    %181 = vmatpush1.msra.mxu0 %v150
    %182 = vmatprep.subr.mxu0 0.0
    %183 = vmatpush1.msra.mxu0 %v151
    %184 = vmatprep.subr.mxu0 0.0
    %185 = vmatpush1.msra.mxu0 0.0
    %186 = vmatprep.subr.mxu0 0.0
    %187 = vmatpush1.msra.mxu0 0.0
    %188 = vmatprep.subr.mxu0 0.0
    %189 = vmatpush1.msra.mxu0 0.0
    %190 = vmatprep.subr.mxu0 0.0
    %191 = vmatpush1.msra.mxu0 0.0
    %192 = vmatprep.subr.mxu0 0.0
    %193 = vmatpush1.msra.mxu0 0.0
    %194 = vmatprep.subr.mxu0 0.0
    %195 = vmatpush1.msra.mxu0 0.0
    %196 = vmatprep.subr.mxu0 0.0
    %197 = vmatpush1.msra.mxu0 0.0
    %198 = vmatprep.subr.mxu0 0.0
    %199 = vmatpush1.msra.mxu0 0.0
    %200 = vmatprep.subr.mxu0 0.0
    %201 = vmatpush1.msra.mxu0 0.0
    %202 = vmatprep.subr.mxu0 0.0
    %203 = vmatpush1.msra.mxu0 0.0
    %204 = vmatprep.subr.mxu0 0.0
    %205 = vmatpush1.msra.mxu0 0.0
    %206 = vmatprep.subr.mxu0 0.0
    %207 = vmatpush1.msra.mxu0 0.0
    %208 = vmatprep.subr.mxu0 0.0
    %209 = vmatpush1.msra.mxu0 0.0
    %210 = vmatprep.subr.mxu0 0.0
    %211 = vmatpush1.msra.mxu0 0.0
    %212 = vmatprep.subr.mxu0 0.0
    %213 = vmatpush1.msra.mxu0 0.0
    %214 = vmatprep.subr.mxu0 0.0
    %215 = vmatpush1.msra.mxu0 0.0
    %216 = vmatprep.mubr.f32.mxu0 0.0
    %217 = vmatmul.mubr.f32.gmra.mrb[0].mxu0 %v135
    %v218 = vpop.f32.mrb[0].mxu0
    %v219 = vadd.f32 0.0, %v218
    %v220 = vpop.f32.mrb[0].mxu0
    %221 = vdwg.mxu0
    %v222 = vsub.f32 0.0, %v219
    %v223 = vmul.f32 %v222, 1.442695
    %v224 = vpow.pop %v223
    %v225 = vadd.f32 %v224, 1.0
    %v226 = vrcp.pop %v225
    %227 = vst [vmem:[#allocation8] sm:$0xff] %v226
    // Predicated region
    $region26: #{tpu_custom_call.1} parent=1 // pred_check
      _
    $region27: #{tpu_custom_call.1} parent=1 // pred_check_branch
      %229 = sbr.rel (0) target = $region29
    $region28: #{tpu_custom_call.1} parent=1 // pred_region
      %s231 = ssub.s32 128, 128
      %232 = vsyncadd [#allocation4], %s231
      %s234 = sshll.u32 [#allocation8], 4
      %s235 = int_to_ptr.vmem [resolvable:$true] %s234
      %237 = dma.vmem_to_hbm [thread:$0]  %s235, 128, %s3, [#allocation4]
    $region29: #{tpu_custom_call.1} parent=1 // pred_fallthru
      _
    // Predicated region
    $region30: #{tpu_custom_call.1} parent=1 // pred_check
      _
    $region31: #{tpu_custom_call.1} parent=1 // pred_check_branch
      %239 = sbr.rel (0) target = $region33
    $region32: #{tpu_custom_call.1} parent=1 // pred_region
      %240 = dma.done [#allocation4], 128
    $region33: #{tpu_custom_call.1} parent=1 // pred_fallthru
      _
    %241 = vsyncpa [#allocation3], 1
    %242 = vsyncpa [#allocation6], 1
    %243 = vsyncpa [#allocation4], 1

</llo_original>
